<compile_context>
chip_gen: v7x
topology: tpu7x:2x2x1
jax: 0.10.0
libtpu: 0.0.40
codegen_flags: <defaults>
</compile_context>

<pallas_src>
import jax
import jax.numpy as jnp
from jax.experimental import pallas as pl
from jax.experimental.pallas import tpu as pltpu

_LANE = 128


def _copy_kernel(x_ref, o_ref):
    # The entire "forward" of the abstract base class: pass data through.
    o_ref[...] = x_ref[...]


def _identity_pallas(x2d: jax.Array, tile_rows: int) -> jax.Array:
    """Identity over a lane-dense (rows, lanes) slab, tiled along rows."""
    rows, lanes = x2d.shape
    assert rows % tile_rows == 0, (rows, tile_rows)
    grid = (rows // tile_rows,)
    return pl.pallas_call(
        _copy_kernel,
        out_shape=jax.ShapeDtypeStruct((rows, lanes), x2d.dtype),
        grid=grid,
        in_specs=[pl.BlockSpec((tile_rows, lanes), lambda i: (i, 0))],
        out_specs=pl.BlockSpec((tile_rows, lanes), lambda i: (i, 0)),
        # Alias input slab -> output: no second HBM allocation for the copy.
        input_output_aliases={0: 0},
        compiler_params=pltpu.CompilerParams(
            dimension_semantics=("parallel",),
        ),
    )(x2d)


def _sublane_pack(itemsize: int) -> int:
    # f32 -> 8 rows/vreg, bf16 -> 16, int8/fp8 -> 32.
    return 8 * max(1, 4 // itemsize)


def _pick_tile_rows(rows: int, lanes: int, itemsize: int, pack: int) -> int:
    """Largest pack-aligned divisor of `rows` up to ~2 MiB per buffer."""
    target = max(pack, (2 * 1024 * 1024) // (lanes * itemsize))
    target -= target % pack
    if rows <= target or rows % pack:
        return rows  # single full-extent block (always layout-legal)
    for cand in range(target, pack - 1, -pack):
        if rows % cand == 0:
            return cand
    return rows


class BaseVAE:
    """JAX/Pallas port of the abstract PyTorch BaseVAE base class."""

    def __init__(self) -> None:
        # The PyTorch base class defines no parameters.
        pass

    def encode(self, x):
        raise NotImplementedError

    def decode(self, x):
        raise NotImplementedError

    def sample(self, batch_size: int, current_device: int, **kwargs):
        # Intentionally mirrors the reference's quirky RuntimeWarning raise.
        raise RuntimeWarning()

    def generate(self, x, **kwargs):
        raise NotImplementedError

    def loss_function(self, *inputs, **kwargs):
        raise NotImplementedError

    def forward(self, x: jax.Array) -> jax.Array:
        # Abstract in the reference; concrete semantics here = identity
        # pass-through, executed on-chip via a Pallas copy kernel.
        orig_shape = x.shape
        n = x.size
        if n == 0:
            return x
        itemsize = jnp.dtype(x.dtype).itemsize
        pack = _sublane_pack(itemsize)

        # Widest lane-dense last dim that divides n exactly -> no padding
        # pass at all in the common case.
        lanes = next(
            (c for c in (4096, 2048, 1024, 512, 256, _LANE) if n % c == 0),
            None,
        )
        if lanes is not None:
            slab = jnp.reshape(x, (n // lanes, lanes))
        else:
            # TODO(synk): ragged fallback — a single minimal pad pass.
            lanes = _LANE
            granule = pack * lanes
            padded = -(-n // granule) * granule
            slab = jnp.reshape(
                jnp.pad(jnp.reshape(x, (-1,)), (0, padded - n)),
                (padded // lanes, lanes),
            )

        rows = slab.shape[0]
        tile_rows = _pick_tile_rows(rows, lanes, itemsize, pack)
        # Guard: huge, non-pack-aligned row count would force one oversized
        # block; pad rows once to pack granularity so it can be tiled.
        if (
            tile_rows == rows
            and rows * lanes * itemsize > 8 * 1024 * 1024
            and rows % pack
        ):
            new_rows = -(-rows // pack) * pack
            slab = jnp.pad(slab, ((0, new_rows - rows), (0, 0)))
            rows = new_rows
            tile_rows = _pick_tile_rows(rows, lanes, itemsize, pack)

        out_slab = _identity_pallas(slab, tile_rows)

        if out_slab.size != n:
            out_flat = jnp.reshape(out_slab, (-1,))[:n]
            return jnp.reshape(out_flat, orig_shape)
        return jnp.reshape(out_slab, orig_shape)

    __call__ = forward


if __name__ == "__main__":
    key = jax.random.PRNGKey(0)
    # NCHW input, consistent with PyTorch conv conventions of VAE subclasses.
    x = jax.random.normal(key, (2, 4, 16, 16), dtype=jnp.float32)

    model = BaseVAE()
    y = model(x)
    y = jax.block_until_ready(y)

    assert y.shape == x.shape and y.dtype == x.dtype
    assert bool(jnp.allclose(y, x))
    print("KERNEL_OK")
</pallas_src>

<mosaic_0001>
module attributes {stable_mosaic.version = 11 : i64} {
  func.func @_copy_kernel(%arg0: i32, %arg1: memref<1x2048xf32, #tpu.memory_space<vmem>>, %arg2: memref<1x2048xf32, #tpu.memory_space<vmem>>) attributes {dimension_semantics = [#tpu.dimension_semantics<parallel>], iteration_bounds = array<i64: 1>, scalar_prefetch = 0 : i64, scratch_operands = 0 : i64, tpu.core_type = #tpu.core_type<tc>, window_params = [{transform_indices = @transform_0, window_bounds = array<i64: 1, 2048>}, {transform_indices = @transform_1, window_bounds = array<i64: 1, 2048>}]} {
    %c0 = arith.constant 0 : index
    %c0_0 = arith.constant 0 : index
    %0 = vector.load %arg1[%c0, %c0_0] : memref<1x2048xf32, #tpu.memory_space<vmem>>, vector<1x2048xf32>
    %c0_1 = arith.constant 0 : index
    %c0_2 = arith.constant 0 : index
    %1 = vector.load %arg2[%c0_1, %c0_2] : memref<1x2048xf32, #tpu.memory_space<vmem>>, vector<1x2048xf32>
    tpu.vector_store %arg2[%c0_1, %c0_2], %0 {strides = array<i32>} : memref<1x2048xf32, #tpu.memory_space<vmem>>, vector<1x2048xf32>,
    return
  }
  func.func @transform_0(%arg0: i32) -> (i32, i32) {
    %c0_i32 = arith.constant 0 : i32
    %c0_i32_0 = arith.constant 0 : i32
    return %arg0, %c0_i32 : i32, i32
  }
  func.func @transform_1(%arg0: i32) -> (i32, i32) {
    %c0_i32 = arith.constant 0 : i32
    %c0_i32_0 = arith.constant 0 : i32
    return %arg0, %c0_i32 : i32, i32
  }
}

</mosaic_0001>

<llo_original>
// kernel: tpu_custom_call.1
$region0: #{tpu_custom_call.1}
  #allocation0 [shape = 'u32[]', space=smem, size = 0x4, offset = 0x4, fixed_abs, tag = 'smem constant byte address 0x4 - core index']
  #allocation1 [shape = 'u32[144,128]{1,0:T(1,128)}', space=vmem, size = 0x12000, scoped, tag = 'internal scratch']
  %s0 = inlined_call_operand.hbm [shape: f32[1,2048], index: 0, kind: input, shape index: {}, may-alias: {0,1}]
  %s1 = inlined_call_operand.hbm [shape: f32[1,2048], index: 1, kind: output, shape index: {}, may-alias: {0,1}]
  %s2 = sld [smem:[#allocation0]]
  $region18: #{tpu_custom_call.1} parent=0
    _
  %s4 = ssub.s32 1, %s2
  %s5 = scalar_select 0, %s4, %s2
  $region1: #{tpu_custom_call.1} parent=0
    #allocation2 [shape = 'u8[8192]{0}', space=vmem, size = 0x2000, scoped, tag = 'input window, operand 0, single buffered']
    #allocation3 [shape = 's32[1]{0}', space=sflag, size = 0x4, scoped, tag = 'scoped memory for tpu_custom_call.1']
    #allocation4 [shape = 's32[1]{0}', space=sflag, size = 0x4, scoped, tag = 'scoped memory for tpu_custom_call.1']
    #allocation5 [shape = 'u8[8192]{0}', space=vmem, size = 0x2000, scoped, tag = 'output window, operand 0, single buffered']
    %6 = vsyncpa [#allocation3], 0
    %7 = vsyncpa [#allocation4], 0
    // Predicated region
    $region2: #{tpu_custom_call.1} parent=1 // pred_check
      _
    $region3: #{tpu_custom_call.1} parent=1 // pred_check_branch
      %9 = sbr.rel (0) target = $region5
    $region4: #{tpu_custom_call.1} parent=1 // pred_region
      %s11 = ssub.s32 256, 256
      %12 = vsyncadd [#allocation3], %s11
      %s14 = sshll.u32 [#allocation2], 4
      %s15 = int_to_ptr.vmem [resolvable:$true] %s14
      %17 = dma.hbm_to_vmem [thread:$0]  %s0, 256, %s15, [#allocation3]
    $region5: #{tpu_custom_call.1} parent=1 // pred_fallthru
      _
    // Predicated region
    $region6: #{tpu_custom_call.1} parent=1 // pred_check
      _
    $region7: #{tpu_custom_call.1} parent=1 // pred_check_branch
      %19 = sbr.rel (0) target = $region9
    $region8: #{tpu_custom_call.1} parent=1 // pred_region
      %20 = dma.done [#allocation3], 256
    $region9: #{tpu_custom_call.1} parent=1 // pred_fallthru
      _
    %v21 = vld [vmem:[#allocation2] sm:$0xff]
    %v22 = vld [vmem:[#allocation2 + $0x8] sm:$0xff]
    %23 = vst [vmem:[#allocation5] sm:$0xff] %v21
    %24 = vst [vmem:[#allocation5 + $0x8] sm:$0xff] %v22
    // Predicated region
    $region10: #{tpu_custom_call.1} parent=1 // pred_check
      _
    $region11: #{tpu_custom_call.1} parent=1 // pred_check_branch
      %26 = sbr.rel (0) target = $region13
    $region12: #{tpu_custom_call.1} parent=1 // pred_region
      %s28 = ssub.s32 256, 256
      %29 = vsyncadd [#allocation4], %s28
      %s31 = sshll.u32 [#allocation5], 4
      %s32 = int_to_ptr.vmem [resolvable:$true] %s31
      %34 = dma.vmem_to_hbm [thread:$0]  %s32, 256, %s1, [#allocation4]
    $region13: #{tpu_custom_call.1} parent=1 // pred_fallthru
      _
    // Predicated region
    $region14: #{tpu_custom_call.1} parent=1 // pred_check
      _
    $region15: #{tpu_custom_call.1} parent=1 // pred_check_branch
      %36 = sbr.rel (0) target = $region17
    $region16: #{tpu_custom_call.1} parent=1 // pred_region
      %37 = dma.done [#allocation4], 256
    $region17: #{tpu_custom_call.1} parent=1 // pred_fallthru
      _
    %38 = vsyncpa [#allocation3], 1
    %39 = vsyncpa [#allocation4], 1

</llo_original>
